<compile_context>
chip_gen: v5e
topology: v5e:2x2
jax: 0.10.0
libtpu: 0.0.40
codegen_flags: <defaults>
</compile_context>

<pallas_src>
import functools

import jax
import jax.numpy as jnp
from jax.experimental import pallas as pl
from jax.experimental.pallas import tpu as pltpu

HIDDEN = 128        # fc1 width (matches nn.Linear(state_size, 128))
HEAD_LANES = 128    # fused actor+critic head padded to a lane-dense width


def _round_up(x, m):
    return ((x + m - 1) // m) * m


def actor_critic_kernel(state_ref, w1_ref, b1_ref, wh_ref, bh_ref, out_ref, *,
                        action_size):
    # fc1 + ReLU (MXU matmul, bf16 operands, f32 accumulation / elementwise)
    x = state_ref[...]                                                 # (TB, S) bf16
    h = jnp.dot(x, w1_ref[...], preferred_element_type=jnp.float32) + b1_ref[...]
    h = jnp.maximum(h, 0.0)                                            # (TB, 128) f32

    # fused actor+critic head: one lane-dense (TB, 128) matmul.
    # columns [0, A)      -> actor logits
    # column  A           -> critic value
    # columns (A, 128)    -> zero padding
    logits = jnp.dot(h.astype(wh_ref.dtype), wh_ref[...],
                     preferred_element_type=jnp.float32) + bh_ref[...]  # (TB, 128) f32

    col = jax.lax.broadcasted_iota(jnp.int32, logits.shape, 1)
    actor_logits = jnp.where(col < action_size, logits, jnp.float32(-jnp.inf))

    # numerically-stable softmax over the first `action_size` lanes only
    m = jnp.max(actor_logits, axis=-1, keepdims=True)
    e = jnp.exp(actor_logits - m)                # padded / critic lanes -> exactly 0
    denom = jnp.sum(e, axis=-1, keepdims=True)
    inv = pl.reciprocal(denom, approx=True)      # EUP vrcp
    inv = inv * (2.0 - denom * inv)              # one Newton step -> ~exact
    probs = e * inv                              # (TB, 128), zeros outside [0, A)

    # single lane-dense store: probs in lanes [0, A), critic value in lane A
    out_ref[...] = probs + jnp.where(col == action_size, logits, 0.0)


def actor_critic_forward(state, params):
    """state: (B, state_size) f32. Returns (action_probs (B, A), state_values (B, 1))."""
    w1, b1, wa, ba, wc, bc = params
    B, S = state.shape
    A = wa.shape[1]
    assert A + 1 <= HEAD_LANES, "action_size must fit in the fused 128-lane head"

    # Fuse actor + critic into a lane-dense (HIDDEN, 128) weight / (1, 128) bias.
    w_heads = jnp.zeros((HIDDEN, HEAD_LANES), jnp.float32)
    w_heads = w_heads.at[:, :A].set(wa).at[:, A:A + 1].set(wc)
    b_heads = jnp.zeros((1, HEAD_LANES), jnp.float32)
    b_heads = b_heads.at[:, :A].set(ba).at[:, A:A + 1].set(bc)

    # bf16 matmul operands (kernel is HBM-bandwidth-bound); biases stay f32.
    state_bf = state.astype(jnp.bfloat16)
    w1_bf = w1.astype(jnp.bfloat16)
    wh_bf = w_heads.astype(jnp.bfloat16)

    # Sublane-aligned batch tile; weights stay VMEM-resident across the grid.
    # TB sized well under the v7x 64 MiB VMEM budget (double-buffered tiles
    # are tiny here: 512*16*2B state + 512*128*4B output per buffer).
    TB = min(512, _round_up(B, 8))
    B_pad = _round_up(B, TB)
    if B_pad != B:
        state_bf = jnp.pad(state_bf, ((0, B_pad - B), (0, 0)))

    # TODO(synk): at tiny B (e.g. 4 rows per RL step) the call is latency-bound;
    # amortize by batching many env steps per call rather than tuning the grid.
    out = pl.pallas_call(
        functools.partial(actor_critic_kernel, action_size=A),
        out_shape=jax.ShapeDtypeStruct((B_pad, HEAD_LANES), jnp.float32),
        grid=(B_pad // TB,),
        in_specs=[
            pl.BlockSpec((TB, S), lambda i: (i, 0)),                 # state (tiled)
            pl.BlockSpec((S, HIDDEN), lambda i: (0, 0)),             # w1 (resident)
            pl.BlockSpec((1, HIDDEN), lambda i: (0, 0)),             # b1
            pl.BlockSpec((HIDDEN, HEAD_LANES), lambda i: (0, 0)),    # fused head W
            pl.BlockSpec((1, HEAD_LANES), lambda i: (0, 0)),         # fused head b
        ],
        out_specs=pl.BlockSpec((TB, HEAD_LANES), lambda i: (i, 0)),
        compiler_params=pltpu.CompilerParams(
            dimension_semantics=("parallel",),
            vmem_limit_bytes=64 * 1024 * 1024,
        ),
    )(state_bf, w1_bf, b1, wh_bf, b_heads)

    probs = out[:B, :A]
    values = out[:B, A:A + 1]
    return probs, values


def init_params(key, state_size, action_size, hidden=HIDDEN):
    """Deterministic synthetic init (PyTorch Linear shapes, stored transposed)."""
    k1, k2, k3, k4, k5, k6 = jax.random.split(key, 6)
    w1 = jax.random.normal(k1, (state_size, hidden), jnp.float32) * 0.1
    b1 = jax.random.normal(k2, (1, hidden), jnp.float32) * 0.01
    wa = jax.random.normal(k3, (hidden, action_size), jnp.float32) * 0.1
    ba = jax.random.normal(k4, (1, action_size), jnp.float32) * 0.01
    wc = jax.random.normal(k5, (hidden, 1), jnp.float32) * 0.1
    bc = jax.random.normal(k6, (1, 1), jnp.float32) * 0.01
    return (w1, b1, wa, ba, wc, bc)


def reference_forward(state, params):
    """Pure-JAX reference using the same bf16 matmul operands as the kernel."""
    w1, b1, wa, ba, wc, bc = params
    x = state.astype(jnp.bfloat16)
    h = jnp.maximum(
        jnp.dot(x, w1.astype(jnp.bfloat16), preferred_element_type=jnp.float32) + b1,
        0.0)
    hb = h.astype(jnp.bfloat16)
    probs = jax.nn.softmax(
        jnp.dot(hb, wa.astype(jnp.bfloat16), preferred_element_type=jnp.float32) + ba,
        axis=-1)
    values = jnp.dot(hb, wc.astype(jnp.bfloat16),
                     preferred_element_type=jnp.float32) + bc
    return probs, values


if __name__ == "__main__":
    B, STATE_SIZE, ACTION_SIZE = 4, 16, 6

    key = jax.random.PRNGKey(0)
    k_state, k_params = jax.random.split(key)

    state = jax.random.normal(k_state, (B, STATE_SIZE), jnp.float32)
    params = init_params(k_params, STATE_SIZE, ACTION_SIZE)

    probs, values = jax.block_until_ready(actor_critic_forward(state, params))

    ref_probs, ref_values = reference_forward(state, params)
    assert probs.shape == (B, ACTION_SIZE) and values.shape == (B, 1)
    assert jnp.allclose(probs, ref_probs, atol=2e-3, rtol=2e-3)
    assert jnp.allclose(values, ref_values, atol=2e-3, rtol=2e-3)
    assert jnp.allclose(jnp.sum(probs, axis=-1), 1.0, atol=1e-4)

    print("KERNEL_OK")
</pallas_src>

<mosaic_0001>
module attributes {stable_mosaic.version = 11 : i64} {
  func.func @actor_critic_kernel(%arg0: i32, %arg1: memref<8x16xbf16, #tpu.memory_space<vmem>>, %arg2: memref<16x128xbf16, #tpu.memory_space<vmem>>, %arg3: memref<1x128xf32, #tpu.memory_space<vmem>>, %arg4: memref<128x128xbf16, #tpu.memory_space<vmem>>, %arg5: memref<1x128xf32, #tpu.memory_space<vmem>>, %arg6: memref<8x128xf32, #tpu.memory_space<vmem>>) attributes {dimension_semantics = [#tpu.dimension_semantics<parallel>], iteration_bounds = array<i64: 1>, scalar_prefetch = 0 : i64, scratch_operands = 0 : i64, tpu.core_type = #tpu.core_type<tc>, window_params = [{transform_indices = @transform_0, window_bounds = array<i64: 8, 16>}, {pipeline_mode = #tpu.pipeline_mode<synchronous>, transform_indices = @transform_1, window_bounds = array<i64: 16, 128>}, {pipeline_mode = #tpu.pipeline_mode<synchronous>, transform_indices = @transform_2, window_bounds = array<i64: 1, 128>}, {pipeline_mode = #tpu.pipeline_mode<synchronous>, transform_indices = @transform_3, window_bounds = array<i64: 128, 128>}, {pipeline_mode = #tpu.pipeline_mode<synchronous>, transform_indices = @transform_4, window_bounds = array<i64: 1, 128>}, {transform_indices = @transform_5, window_bounds = array<i64: 8, 128>}]} {
    %c0 = arith.constant 0 : index
    %c0_0 = arith.constant 0 : index
    %0 = vector.load %arg1[%c0, %c0_0] : memref<8x16xbf16, #tpu.memory_space<vmem>>, vector<8x16xbf16>
    %c0_1 = arith.constant 0 : index
    %c0_2 = arith.constant 0 : index
    %1 = vector.load %arg2[%c0_1, %c0_2] : memref<16x128xbf16, #tpu.memory_space<vmem>>, vector<16x128xbf16>
    %cst = arith.constant dense<0.000000e+00> : vector<8x128xf32>
    %2 = tpu.matmul %0, %1, %cst {dimension_numbers = #tpu.dot_dimension_numbers<[1], [0], [0], [1], [0, 0, 1, 1], [], []>} : vector<8x16xbf16>, vector<16x128xbf16>, vector<8x128xf32> -> vector<8x128xf32>
    %c0_3 = arith.constant 0 : index
    %c0_4 = arith.constant 0 : index
    %3 = vector.load %arg3[%c0_3, %c0_4] : memref<1x128xf32, #tpu.memory_space<vmem>>, vector<1x128xf32>
    %4 = vector.broadcast %3 : vector<1x128xf32> to vector<8x128xf32>
    %5 = arith.addf %2, %4 : vector<8x128xf32>
    %cst_5 = arith.constant 0.000000e+00 : f32
    %6 = vector.broadcast %cst_5 : f32 to vector<8x128xf32>
    %7 = arith.maximumf %5, %6 : vector<8x128xf32>
    %8 = arith.truncf %7 : vector<8x128xf32> to vector<8x128xbf16>
    %c0_6 = arith.constant 0 : index
    %c0_7 = arith.constant 0 : index
    %9 = vector.load %arg4[%c0_6, %c0_7] : memref<128x128xbf16, #tpu.memory_space<vmem>>, vector<128x128xbf16>
    %cst_8 = arith.constant dense<0.000000e+00> : vector<8x128xf32>
    %10 = tpu.matmul %8, %9, %cst_8 {dimension_numbers = #tpu.dot_dimension_numbers<[1], [0], [0], [1], [0, 0, 1, 1], [], []>} : vector<8x128xbf16>, vector<128x128xbf16>, vector<8x128xf32> -> vector<8x128xf32>
    %c0_9 = arith.constant 0 : index
    %c0_10 = arith.constant 0 : index
    %11 = vector.load %arg5[%c0_9, %c0_10] : memref<1x128xf32, #tpu.memory_space<vmem>>, vector<1x128xf32>
    %12 = vector.broadcast %11 : vector<1x128xf32> to vector<8x128xf32>
    %13 = arith.addf %10, %12 : vector<8x128xf32>
    %14 = tpu.iota {dimensions = array<i32: 1>} : vector<8x128xi32>
    %c6_i32 = arith.constant 6 : i32
    %15 = vector.broadcast %c6_i32 : i32 to vector<8x128xi32>
    %16 = arith.cmpi slt, %14, %15 : vector<8x128xi32>
    %cst_11 = arith.constant 0xFF800000 : f32
    %17 = vector.broadcast %cst_11 : f32 to vector<8x128xf32>
    %18 = arith.select %16, %13, %17 : vector<8x128xi1>, vector<8x128xf32>
    %cst_12 = arith.constant dense<0xFF800000> : vector<8xf32>
    %19 = vector.multi_reduction <maximumf>, %18, %cst_12 [1] : vector<8x128xf32> to vector<8xf32>
    %20 = vector.shape_cast %19 : vector<8xf32> to vector<8x1xf32>
    %21 = vector.broadcast %20 : vector<8x1xf32> to vector<8x128xf32>
    %22 = arith.subf %18, %21 : vector<8x128xf32>
    %23 = math.exp %22 : vector<8x128xf32>
    %cst_13 = arith.constant dense<0.000000e+00> : vector<8xf32>
    %24 = vector.multi_reduction <add>, %23, %cst_13 [1] : vector<8x128xf32> to vector<8xf32>
    %25 = vector.shape_cast %24 : vector<8xf32> to vector<8x1xf32>
    %26 = tpu.reciprocal %25 {approx = true} : vector<8x1xf32> -> vector<8x1xf32>
    %27 = arith.mulf %25, %26 : vector<8x1xf32>
    %cst_14 = arith.constant 2.000000e+00 : f32
    %28 = vector.broadcast %cst_14 : f32 to vector<8x1xf32>
    %29 = arith.subf %28, %27 : vector<8x1xf32>
    %30 = arith.mulf %26, %29 : vector<8x1xf32>
    %31 = vector.broadcast %30 : vector<8x1xf32> to vector<8x128xf32>
    %32 = arith.mulf %23, %31 : vector<8x128xf32>
    %c6_i32_15 = arith.constant 6 : i32
    %33 = vector.broadcast %c6_i32_15 : i32 to vector<8x128xi32>
    %34 = arith.cmpi eq, %14, %33 : vector<8x128xi32>
    %cst_16 = arith.constant 0.000000e+00 : f32
    %35 = vector.broadcast %cst_16 : f32 to vector<8x128xf32>
    %36 = arith.select %34, %13, %35 : vector<8x128xi1>, vector<8x128xf32>
    %37 = arith.addf %32, %36 : vector<8x128xf32>
    %c0_17 = arith.constant 0 : index
    %c0_18 = arith.constant 0 : index
    %38 = vector.load %arg6[%c0_17, %c0_18] : memref<8x128xf32, #tpu.memory_space<vmem>>, vector<8x128xf32>
    tpu.vector_store %arg6[%c0_17, %c0_18], %37 {strides = array<i32>} : memref<8x128xf32, #tpu.memory_space<vmem>>, vector<8x128xf32>,
    return
  }
  func.func @transform_0(%arg0: i32) -> (i32, i32) {
    %c0_i32 = arith.constant 0 : i32
    %c0_i32_0 = arith.constant 0 : i32
    return %arg0, %c0_i32 : i32, i32
  }
  func.func @transform_1(%arg0: i32) -> (i32, i32) {
    %c0_i32 = arith.constant 0 : i32
    %c0_i32_0 = arith.constant 0 : i32
    %c0_i32_1 = arith.constant 0 : i32
    return %c0_i32, %c0_i32_0 : i32, i32
  }
  func.func @transform_2(%arg0: i32) -> (i32, i32) {
    %c0_i32 = arith.constant 0 : i32
    %c0_i32_0 = arith.constant 0 : i32
    %c0_i32_1 = arith.constant 0 : i32
    return %c0_i32, %c0_i32_0 : i32, i32
  }
  func.func @transform_3(%arg0: i32) -> (i32, i32) {
    %c0_i32 = arith.constant 0 : i32
    %c0_i32_0 = arith.constant 0 : i32
    %c0_i32_1 = arith.constant 0 : i32
    return %c0_i32, %c0_i32_0 : i32, i32
  }
  func.func @transform_4(%arg0: i32) -> (i32, i32) {
    %c0_i32 = arith.constant 0 : i32
    %c0_i32_0 = arith.constant 0 : i32
    %c0_i32_1 = arith.constant 0 : i32
    return %c0_i32, %c0_i32_0 : i32, i32
  }
  func.func @transform_5(%arg0: i32) -> (i32, i32) {
    %c0_i32 = arith.constant 0 : i32
    %c0_i32_0 = arith.constant 0 : i32
    return %arg0, %c0_i32 : i32, i32
  }
}

</mosaic_0001>

<llo_original>
// kernel: tpu_custom_call.1
$region0: #{tpu_custom_call.1}
  #allocation0 [shape = 'u32[]', space=smem, size = 0x4, offset = 0x4, fixed_abs, tag = 'smem constant byte address 0x4 - core index']
  #allocation1 [shape = 'u32[72,128]{1,0:T(1,128)}', space=vmem, size = 0x9000, scoped, tag = 'internal scratch']
  %s0 = inlined_call_operand.hbm [shape: bf16[8,16], index: 0, kind: input, shape index: {}]
  %s1 = inlined_call_operand.hbm [shape: bf16[16,128], index: 1, kind: input, shape index: {}]
  %s2 = inlined_call_operand.vmem [shape: f32[1,128], index: 2, kind: input, shape index: {}]
  %s3 = inlined_call_operand.hbm [shape: bf16[128,128], index: 3, kind: input, shape index: {}]
  %s4 = inlined_call_operand.vmem [shape: f32[1,128], index: 4, kind: input, shape index: {}]
  %s5 = inlined_call_operand.hbm [shape: f32[8,128], index: 5, kind: output, shape index: {}]
  %s6 = sld [smem:[#allocation0]]
  $region42: #{tpu_custom_call.1} parent=0
    _
  %s8 = ssub.s32 1, %s6
  %s9 = scalar_select 0, %s8, %s6
  $region1: #{tpu_custom_call.1} parent=0
    #allocation2 [shape = 'u8[2048]{0}', space=vmem, size = 0x800, scoped, tag = 'input window, operand 0, single buffered']
    #allocation3 [shape = 's32[1]{0}', space=sflag, size = 0x4, scoped, tag = 'scoped memory for tpu_custom_call.1']
    #allocation4 [shape = 's32[1]{0}', space=sflag, size = 0x4, scoped, tag = 'scoped memory for tpu_custom_call.1']
    #allocation5 [shape = 'u8[4096]{0}', space=vmem, size = 0x1000, scoped, tag = 'input window, operand 1, single buffered']
    #allocation6 [shape = 's32[1]{0}', space=sflag, size = 0x4, scoped, tag = 'scoped memory for tpu_custom_call.1']
    #allocation7 [shape = 'u8[32768]{0}', space=vmem, size = 0x8000, scoped, tag = 'input window, operand 3, single buffered']
    #allocation8 [shape = 'u8[4096]{0}', space=vmem, size = 0x1000, scoped, tag = 'output window, operand 0, single buffered']
    %10 = vsyncpa [#allocation3], 0
    %11 = vsyncpa [#allocation6], 0
    %12 = vsyncpa [#allocation4], 0
    // Predicated region
    $region2: #{tpu_custom_call.1} parent=1 // pred_check
      _
    $region3: #{tpu_custom_call.1} parent=1 // pred_check_branch
      %14 = sbr.rel (0) target = $region5
    $region4: #{tpu_custom_call.1} parent=1 // pred_region
      %16 = vsyncadd [#allocation3], 0
      %s18 = sshll.u32 %s0, 4
      %s19 = int_to_ptr.hbm [resolvable:$true] %s18
      %s20 = sshll.u32 [#allocation2], 4
      %s21 = int_to_ptr.vmem [resolvable:$true] %s20
      %23 = dma.hbm_to_vmem [thread:$0]  %s19, 64, %s21, [#allocation3]
    $region5: #{tpu_custom_call.1} parent=1 // pred_fallthru
      _
    // Predicated region
    $region6: #{tpu_custom_call.1} parent=1 // pred_check
      _
    $region7: #{tpu_custom_call.1} parent=1 // pred_check_branch
      %25 = sbr.rel (0) target = $region9
    $region8: #{tpu_custom_call.1} parent=1 // pred_region
      %27 = vsyncadd [#allocation6], 0
      %s28 = sshll.u32 %s1, 4
      %s29 = int_to_ptr.hbm [resolvable:$true] %s28
      %s30 = sshll.u32 [#allocation5], 4
      %s31 = int_to_ptr.vmem [resolvable:$true] %s30
      %36 = dma.hbm_to_vmem [thread:$0]  %s29, 128, %s31, [#allocation6], 64, 64, 4
    $region9: #{tpu_custom_call.1} parent=1 // pred_fallthru
      _
    // Predicated region
    $region10: #{tpu_custom_call.1} parent=1 // pred_check
      _
    $region11: #{tpu_custom_call.1} parent=1 // pred_check_branch
      %38 = sbr.rel (0) target = $region13
    $region12: #{tpu_custom_call.1} parent=1 // pred_region
      _
    $region13: #{tpu_custom_call.1} parent=1 // pred_fallthru
      _
    // Predicated region
    $region14: #{tpu_custom_call.1} parent=1 // pred_check
      _
    $region15: #{tpu_custom_call.1} parent=1 // pred_check_branch
      %40 = sbr.rel (0) target = $region17
    $region16: #{tpu_custom_call.1} parent=1 // pred_region
      %42 = vsyncadd [#allocation6], 0
      %s43 = sshll.u32 %s3, 4
      %s44 = int_to_ptr.hbm [resolvable:$true] %s43
      %s45 = sshll.u32 [#allocation7], 4
      %s46 = int_to_ptr.vmem [resolvable:$true] %s45
      %51 = dma.hbm_to_vmem [thread:$0]  %s44, 1024, %s46, [#allocation6], 64, 64, 4
    $region17: #{tpu_custom_call.1} parent=1 // pred_fallthru
      _
    // Predicated region
    $region18: #{tpu_custom_call.1} parent=1 // pred_check
      _
    $region19: #{tpu_custom_call.1} parent=1 // pred_check_branch
      %53 = sbr.rel (0) target = $region21
    $region20: #{tpu_custom_call.1} parent=1 // pred_region
      _
    $region21: #{tpu_custom_call.1} parent=1 // pred_fallthru
      _
    // Predicated region
    $region22: #{tpu_custom_call.1} parent=1 // pred_check
      _
    $region23: #{tpu_custom_call.1} parent=1 // pred_check_branch
      %55 = sbr.rel (0) target = $region25
    $region24: #{tpu_custom_call.1} parent=1 // pred_region
      %57 = dma.done [#allocation3], 64
    $region25: #{tpu_custom_call.1} parent=1 // pred_fallthru
      _
    // Predicated region
    $region26: #{tpu_custom_call.1} parent=1 // pred_check
      _
    $region27: #{tpu_custom_call.1} parent=1 // pred_check_branch
      %59 = sbr.rel (0) target = $region29
    $region28: #{tpu_custom_call.1} parent=1 // pred_region
      %61 = dma.done [#allocation6], 128
    $region29: #{tpu_custom_call.1} parent=1 // pred_fallthru
      _
    // Predicated region
    $region30: #{tpu_custom_call.1} parent=1 // pred_check
      _
    $region31: #{tpu_custom_call.1} parent=1 // pred_check_branch
      %63 = sbr.rel (0) target = $region33
    $region32: #{tpu_custom_call.1} parent=1 // pred_region
      %65 = dma.done [#allocation6], 1024
    $region33: #{tpu_custom_call.1} parent=1 // pred_fallthru
      _
    %v67 = vld [vmem:[#allocation2] sm:$0xf]
    %v68 = vld [vmem:[#allocation5] sm:$0xf]
    %v69 = vld [vmem:[#allocation5 + $0x4] sm:$0xf]
    %v70 = vld [vmem:[%s2] sm:$0x1]
    %v72 = vperm.slane %v70, 0
    %v76 = vunpack.c.l.b16 %v68
    %v77 = vunpack.c.l.b16 %v69
    %v78 = vpack.c.b16 %v77, %v76
    %vm80 = vcmask 130048
    %v82 = vsel %vm80, %v67, 0
    %84 = vmatpush.bf16.msra.mxu0 0
    %85 = vmatpush.bf16.msra.mxu0 0
    %86 = vmatpush.bf16.msra.mxu0 0
    %87 = vmatpush.bf16.msra.mxu0 0
    %88 = vmatpush.bf16.msra.mxu0 0
    %89 = vmatpush.bf16.msra.mxu0 0
    %90 = vmatpush.bf16.msra.mxu0 0
    %91 = vmatpush.bf16.msra.mxu0 %v78
    %92 = vmatmul.bf16.gmra.mxu0 %v82
    %v93 = vpop.f32.mrf.mxu0
    %v94 = vadd.f32 %v72, %v93
    %v95 = vpop.f32.mrf.mxu0
    %96 = vdwg.mxu0
    %v97 = vmax.f32 %v94, 0.0
    %v98 = vpack.c.bf16 %v97, %v97
    %v99 = vld [vmem:[#allocation7] sm:$0xf]
    %v100 = vld [vmem:[#allocation7 + $0x4] sm:$0xf]
    %v101 = vld [vmem:[#allocation7 + $0x8] sm:$0xf]
    %v102 = vld [vmem:[#allocation7 + $0xc] sm:$0xf]
    %v103 = vld [vmem:[#allocation7 + $0x10] sm:$0xf]
    %v104 = vld [vmem:[#allocation7 + $0x14] sm:$0xf]
    %v105 = vld [vmem:[#allocation7 + $0x18] sm:$0xf]
    %v106 = vld [vmem:[#allocation7 + $0x1c] sm:$0xf]
    %v107 = vld [vmem:[#allocation7 + $0x20] sm:$0xf]
    %v108 = vld [vmem:[#allocation7 + $0x24] sm:$0xf]
    %v109 = vld [vmem:[#allocation7 + $0x28] sm:$0xf]
    %v110 = vld [vmem:[#allocation7 + $0x2c] sm:$0xf]
    %v111 = vld [vmem:[#allocation7 + $0x30] sm:$0xf]
    %v112 = vld [vmem:[#allocation7 + $0x34] sm:$0xf]
    %v113 = vld [vmem:[#allocation7 + $0x38] sm:$0xf]
    %v114 = vld [vmem:[#allocation7 + $0x3c] sm:$0xf]
    %v115 = vld [vmem:[%s4] sm:$0x1]
    %v117 = vperm.slane %v115, 0
    %v135 = vunpack.c.l.b16 %v99
    %v136 = vunpack.c.l.b16 %v100
    %v137 = vunpack.c.l.b16 %v101
    %v138 = vunpack.c.l.b16 %v102
    %v139 = vunpack.c.l.b16 %v103
    %v140 = vunpack.c.l.b16 %v104
    %v141 = vunpack.c.l.b16 %v105
    %v142 = vunpack.c.l.b16 %v106
    %v143 = vunpack.c.l.b16 %v107
    %v144 = vunpack.c.l.b16 %v108
    %v145 = vunpack.c.l.b16 %v109
    %v146 = vunpack.c.l.b16 %v110
    %v147 = vunpack.c.l.b16 %v111
    %v148 = vunpack.c.l.b16 %v112
    %v149 = vunpack.c.l.b16 %v113
    %v150 = vunpack.c.l.b16 %v114
    %v151 = vpack.c.b16 %v136, %v135
    %v152 = vpack.c.b16 %v138, %v137
    %v153 = vpack.c.b16 %v140, %v139
    %v154 = vpack.c.b16 %v142, %v141
    %v155 = vpack.c.b16 %v144, %v143
    %v156 = vpack.c.b16 %v146, %v145
    %v157 = vpack.c.b16 %v148, %v147
    %v158 = vpack.c.b16 %v150, %v149
    %167 = vmatpush.bf16.msra.mxu0 %v158
    %168 = vmatpush.bf16.msra.mxu0 %v157
    %169 = vmatpush.bf16.msra.mxu0 %v156
    %170 = vmatpush.bf16.msra.mxu0 %v155
    %171 = vmatpush.bf16.msra.mxu0 %v154
    %172 = vmatpush.bf16.msra.mxu0 %v153
    %173 = vmatpush.bf16.msra.mxu0 %v152
    %174 = vmatpush.bf16.msra.mxu0 %v151
    %175 = vmatmul.bf16.gmra.mxu0 %v98
    %v176 = vpop.f32.mrf.mxu0
    %v177 = vadd.f32 %v117, %v176
    %v178 = vpop.f32.mrf.mxu0
    %179 = vdwg.mxu0
    %v180 = vlaneseq
    %v181 = vand.u32 %v180, 127
    %vm182 = vcmp.lt.s32.totalorder %v181, 6
    %v183 = vsel %vm182, %v177, -inf
    %184 = vmax.xlane.f32.xlu0 %v183
    %v185 = vpop.xlane.xlu0 %184
    %v186 = vsub.f32 %v183, %v185
    %v187 = vmul.f32 %v186, 1.442695
    %v188 = vpow.pop %v187
    %189 = vadd.xlane.f32.xlu0 %v188
    %v190 = vpop.xlane.xlu0 %189
    %v191 = vrcp.pop %v190
    %v192 = vmul.f32 %v190, %v191
    %v193 = vsub.f32 2.0, %v192
    %v194 = vmul.f32 %v191, %v193
    %v195 = vmul.f32 %v188, %v194
    %vm196 = vcmp.eq.s32.totalorder %v181, 6
    %v197 = vsel %vm196, %v177, 0.0
    %v198 = vadd.f32 %v195, %v197
    %199 = vst [vmem:[#allocation8] sm:$0xff] %v198
    // Predicated region
    $region34: #{tpu_custom_call.1} parent=1 // pred_check
      _
    $region35: #{tpu_custom_call.1} parent=1 // pred_check_branch
      %201 = sbr.rel (0) target = $region37
    $region36: #{tpu_custom_call.1} parent=1 // pred_region
      %203 = vsyncadd [#allocation4], 0
      %s205 = sshll.u32 [#allocation8], 4
      %s206 = int_to_ptr.vmem [resolvable:$true] %s205
      %s207 = sshll.u32 %s5, 4
      %s208 = int_to_ptr.hbm [resolvable:$true] %s207
      %210 = dma.vmem_to_hbm [thread:$0]  %s206, 128, %s208, [#allocation4]
    $region37: #{tpu_custom_call.1} parent=1 // pred_fallthru
      _
    // Predicated region
    $region38: #{tpu_custom_call.1} parent=1 // pred_check
      _
    $region39: #{tpu_custom_call.1} parent=1 // pred_check_branch
      %212 = sbr.rel (0) target = $region41
    $region40: #{tpu_custom_call.1} parent=1 // pred_region
      %214 = dma.done [#allocation4], 128
    $region41: #{tpu_custom_call.1} parent=1 // pred_fallthru
      _
    %215 = vsyncpa [#allocation3], 1
    %216 = vsyncpa [#allocation6], 1
    %217 = vsyncpa [#allocation4], 1

</llo_original>
